<compile_context>
chip_gen: v7x
topology: tpu7x:2x2x1
jax: 0.10.0
libtpu: 0.0.40
codegen_flags: <defaults>
</compile_context>

<pallas_src>
import jax
import jax.numpy as jnp
import numpy as np
from jax import lax
from jax.experimental import pallas as pl
from jax.experimental.pallas import tpu as pltpu

TN = 128  # rows gathered per grid step (natural MXU tile on v5e; safe on v6e/v7x)


def _round_up(x, m):
    return (x + m - 1) // m * m


# ---------------------------------------------------------------------------
# One-time table precompute kernels  (O(M*F*H) instead of O(N*F*H))
# For very large F/H these would be tiled over a K grid axis; at model sizes
# used here a single full-block MXU matmul is sufficient.
# ---------------------------------------------------------------------------

def _emb_table_kernel(meta_ref, w_ref, out_ref):
    # meta_ref: (M_pad, F)   w_ref: (F, H)   out_ref: (M_pad, H)
    out_ref[...] = jnp.dot(meta_ref[...], w_ref[...],
                           preferred_element_type=jnp.float32)


def _bias_table_kernel(meta_t_ref, w_ref, b_ref, out_ref):
    # meta_t_ref: (F, M_pad)   w_ref: (1, F)   b_ref: (1,) scalar in SMEM
    # out_ref:   (1, M_pad)  -- lane-dense bias table
    out_ref[...] = jnp.dot(w_ref[...], meta_t_ref[...],
                           preferred_element_type=jnp.float32) + b_ref[0]


# ---------------------------------------------------------------------------
# Batched gather kernels (TN rows per grid step, tables VMEM-resident)
# ---------------------------------------------------------------------------

def _gather_emb_kernel(idx_ref, table_ref, out_ref):
    # idx_ref:   (TN, 1) int32 (sublane-major indices for this block)
    # table_ref: (M_pad, H) f32, resident across grid steps
    # out_ref:   (TN, H) f32
    m_pad = table_ref.shape[0]
    tn = idx_ref.shape[0]
    onehot = (lax.broadcasted_iota(jnp.int32, (tn, m_pad), 1)
              == idx_ref[...]).astype(jnp.float32)               # (TN, M_pad)
    out_ref[...] = jnp.dot(onehot, table_ref[...],
                           preferred_element_type=jnp.float32)   # (TN, H) on MXU


def _gather_bias_kernel(idx_ref, ex_ref, btbl_ref, itbl_ref, out_ref):
    # idx_ref/ex_ref: (1, TN) int32   btbl_ref: (1, M_pad)   itbl_ref: (1, Q_pad)
    # out_ref: (1, TN)  -- lane-dense output block (unmasked vst)
    m_pad = btbl_ref.shape[1]
    q_pad = itbl_ref.shape[1]
    tn = idx_ref.shape[1]
    oh_m = (lax.broadcasted_iota(jnp.int32, (m_pad, tn), 0)
            == idx_ref[...]).astype(jnp.float32)                 # (M_pad, TN)
    oh_q = (lax.broadcasted_iota(jnp.int32, (q_pad, tn), 0)
            == ex_ref[...]).astype(jnp.float32)                  # (Q_pad, TN)
    vals = jnp.dot(btbl_ref[...], oh_m, preferred_element_type=jnp.float32)
    vals = vals + jnp.dot(itbl_ref[...], oh_q, preferred_element_type=jnp.float32)
    out_ref[...] = vals


def _gather_bias_noitem_kernel(idx_ref, btbl_ref, out_ref):
    # item=False path: no item_bias table materialized or gathered at all.
    m_pad = btbl_ref.shape[1]
    tn = idx_ref.shape[1]
    oh_m = (lax.broadcasted_iota(jnp.int32, (m_pad, tn), 0)
            == idx_ref[...]).astype(jnp.float32)
    out_ref[...] = jnp.dot(btbl_ref[...], oh_m,
                           preferred_element_type=jnp.float32)


# ---------------------------------------------------------------------------
# Wrappers (padding / reshaping plumbing + pallas_call setup)
# ---------------------------------------------------------------------------

def decode_dkt(indices_flat, metadata, feat_embedding_w):
    """decoded = metadata[indices] @ W  ==  (metadata @ W)[indices]  -> (N, H)"""
    M, F = metadata.shape
    H = feat_embedding_w.shape[1]
    N = indices_flat.shape[0]

    # one-time table: emb_table = metadata @ W
    M_pad = _round_up(M, 8)
    meta_pad = jnp.zeros((M_pad, F), jnp.float32).at[:M].set(
        metadata.astype(jnp.float32))
    emb_table = pl.pallas_call(
        _emb_table_kernel,
        out_shape=jax.ShapeDtypeStruct((M_pad, H), jnp.float32),
        grid=(1,),
        in_specs=[pl.BlockSpec((M_pad, F), lambda i: (0, 0)),
                  pl.BlockSpec((F, H), lambda i: (0, 0))],
        out_specs=pl.BlockSpec((M_pad, H), lambda i: (0, 0)),
    )(meta_pad, feat_embedding_w.astype(jnp.float32))

    # batched gather: TN rows / grid step, emb_table VMEM-resident
    N_pad = _round_up(N, TN)
    G = N_pad // TN
    idx_col = jnp.zeros((N_pad, 1), jnp.int32).at[:N, 0].set(
        indices_flat.astype(jnp.int32))

    out = pl.pallas_call(
        _gather_emb_kernel,
        out_shape=jax.ShapeDtypeStruct((N_pad, H), jnp.float32),
        grid=(G,),
        in_specs=[pl.BlockSpec((TN, 1), lambda g: (g, 0)),
                  pl.BlockSpec((M_pad, H), lambda g: (0, 0))],   # resident table
        out_specs=pl.BlockSpec((TN, H), lambda g: (g, 0)),
        compiler_params=pltpu.CompilerParams(
            dimension_semantics=("parallel",)),                  # shards over v7x TCs
    )(idx_col, emb_table)
    return out[:N]


def decode_bias(indices_flat, exercises_flat, metadata, linear_w, linear_b,
                item_bias_tbl, use_item):
    """decoded_bias = (metadata @ w.T + b)[indices] (+ item_bias[exercises]) -> (N,)"""
    M, F = metadata.shape
    N = indices_flat.shape[0]
    Q = item_bias_tbl.shape[0]

    # one-time table: bias_table = metadata @ w.T + b, laid out lane-dense (1, M_pad)
    M_pad = _round_up(M, 8)
    meta_t_pad = jnp.zeros((F, M_pad), jnp.float32).at[:, :M].set(
        metadata.astype(jnp.float32).T)
    bias_table = pl.pallas_call(
        _bias_table_kernel,
        out_shape=jax.ShapeDtypeStruct((1, M_pad), jnp.float32),
        grid=(1,),
        in_specs=[pl.BlockSpec((F, M_pad), lambda i: (0, 0)),
                  pl.BlockSpec((1, F), lambda i: (0, 0)),
                  pl.BlockSpec(memory_space=pltpu.MemorySpace.SMEM)],
        out_specs=pl.BlockSpec((1, M_pad), lambda i: (0, 0)),
    )(meta_t_pad, linear_w.astype(jnp.float32),
      linear_b.reshape(1).astype(jnp.float32))

    N_pad = _round_up(N, TN)
    G = N_pad // TN
    idx = jnp.zeros((N_pad,), jnp.int32).at[:N].set(
        indices_flat.astype(jnp.int32)).reshape(G, TN)

    if use_item:
        Q_pad = _round_up(Q, 8)
        itbl = jnp.zeros((1, Q_pad), jnp.float32).at[0, :Q].set(
            item_bias_tbl.astype(jnp.float32)[:, 0])
        ex = jnp.zeros((N_pad,), jnp.int32).at[:N].set(
            exercises_flat.astype(jnp.int32)).reshape(G, TN)
        out = pl.pallas_call(
            _gather_bias_kernel,
            out_shape=jax.ShapeDtypeStruct((G, TN), jnp.float32),
            grid=(G,),
            in_specs=[pl.BlockSpec((1, TN), lambda g: (g, 0)),
                      pl.BlockSpec((1, TN), lambda g: (g, 0)),
                      pl.BlockSpec((1, M_pad), lambda g: (0, 0)),   # resident
                      pl.BlockSpec((1, Q_pad), lambda g: (0, 0))],  # resident
            out_specs=pl.BlockSpec((1, TN), lambda g: (g, 0)),
            compiler_params=pltpu.CompilerParams(
                dimension_semantics=("parallel",)),
        )(idx, ex, bias_table, itbl)
    else:
        out = pl.pallas_call(
            _gather_bias_noitem_kernel,
            out_shape=jax.ShapeDtypeStruct((G, TN), jnp.float32),
            grid=(G,),
            in_specs=[pl.BlockSpec((1, TN), lambda g: (g, 0)),
                      pl.BlockSpec((1, M_pad), lambda g: (0, 0))],
            out_specs=pl.BlockSpec((1, TN), lambda g: (g, 0)),
            compiler_params=pltpu.CompilerParams(
                dimension_semantics=("parallel",)),
        )(idx, bias_table)
    return out.reshape(N_pad)[:N]


def decoder_forward(exercises, indices, metadata, params, *, dkt, item):
    """Mirrors torch Decoder.forward: returns (decoded, decoded_bias)."""
    B, T = indices.shape
    idx_flat = indices.reshape(-1).astype(jnp.int32)
    decoded = None
    decoded_bias = None
    if dkt:
        d = decode_dkt(idx_flat, metadata, params["feat_embedding"])
        decoded = d.reshape(B, T, -1)
    else:
        ex_flat = exercises.reshape(-1).astype(jnp.int32)
        db = decode_bias(idx_flat, ex_flat, metadata, params["linear_w"],
                         params["linear_b"], params["item_bias"], item)
        decoded_bias = db.reshape(B, T)
    return decoded, decoded_bias


# ---------------------------------------------------------------------------
# Demo / self-check
# ---------------------------------------------------------------------------

if __name__ == "__main__":
    key = jax.random.PRNGKey(0)
    B, T = 2, 8          # batch, sequence length of `indices` / `exercises`
    H = 32               # hidden_size (options.d)
    F = 32               # nb_distinct_features
    M = 24               # len(metadata)
    Q = 12               # nb_distinct_questions

    k_meta, k_fe, k_fb, k_lw, k_lb, k_ib, k_idx, k_ex = jax.random.split(key, 8)
    metadata = jax.random.normal(k_meta, (M, F), dtype=jnp.float32)
    indices = jax.random.randint(k_idx, (B, T), 0, M, dtype=jnp.int32)
    exercises = jax.random.randint(k_ex, (B, T), 0, Q, dtype=jnp.int32)

    params = {
        "feat_embedding": jax.random.normal(k_fe, (F, H), jnp.float32) * 0.1,
        # feat_bias is declared in the torch __init__ but never used in forward
        "feat_bias": jax.random.normal(k_fb, (F, 1), jnp.float32),
        "linear_w": jax.random.normal(k_lw, (1, F), jnp.float32) * 0.1,
        "linear_b": jax.random.normal(k_lb, (1,), jnp.float32),
        "item_bias": jax.random.normal(k_ib, (Q, 1), jnp.float32),
    }

    # --- options.dkt = True path ---
    decoded, _ = decoder_forward(exercises, indices, metadata, params,
                                 dkt=True, item=True)
    decoded = jax.block_until_ready(decoded)

    # --- options.dkt = False, options.i = True path ---
    _, decoded_bias = decoder_forward(exercises, indices, metadata, params,
                                      dkt=False, item=True)
    decoded_bias = jax.block_until_ready(decoded_bias)

    # --- options.dkt = False, options.i = False path ---
    _, decoded_bias_noitem = decoder_forward(exercises, indices, metadata, params,
                                             dkt=False, item=False)
    decoded_bias_noitem = jax.block_until_ready(decoded_bias_noitem)

    # pure-JAX reference (sparse one-hot matmul == row gather)
    gathered = metadata[indices.reshape(-1)]                        # (N, F)
    decoded_ref = (gathered @ params["feat_embedding"]).reshape(B, T, H)
    lin_ref = (gathered @ params["linear_w"].T
               + params["linear_b"]).reshape(B, T)
    bias_ref = lin_ref + params["item_bias"][exercises][..., 0]

    assert np.allclose(np.asarray(decoded), np.asarray(decoded_ref),
                       rtol=1e-5, atol=1e-5)
    assert np.allclose(np.asarray(decoded_bias), np.asarray(bias_ref),
                       rtol=1e-5, atol=1e-5)
    assert np.allclose(np.asarray(decoded_bias_noitem), np.asarray(lin_ref),
                       rtol=1e-5, atol=1e-5)

    print("KERNEL_OK")
</pallas_src>

<mosaic_0001>
module attributes {stable_mosaic.version = 11 : i64} {
  func.func @_emb_table_kernel(%arg0: i32, %arg1: memref<24x32xf32, #tpu.memory_space<vmem>>, %arg2: memref<32x32xf32, #tpu.memory_space<vmem>>, %arg3: memref<24x32xf32, #tpu.memory_space<vmem>>) attributes {dimension_semantics = [#tpu.dimension_semantics<arbitrary>], iteration_bounds = array<i64: 1>, scalar_prefetch = 0 : i64, scratch_operands = 0 : i64, tpu.core_type = #tpu.core_type<tc>, window_params = [{pipeline_mode = #tpu.pipeline_mode<synchronous>, transform_indices = @transform_0, window_bounds = array<i64: 24, 32>}, {pipeline_mode = #tpu.pipeline_mode<synchronous>, transform_indices = @transform_1, window_bounds = array<i64: 32, 32>}, {pipeline_mode = #tpu.pipeline_mode<synchronous>, transform_indices = @transform_2, window_bounds = array<i64: 24, 32>}]} {
    %c0 = arith.constant 0 : index
    %c0_0 = arith.constant 0 : index
    %0 = vector.load %arg1[%c0, %c0_0] : memref<24x32xf32, #tpu.memory_space<vmem>>, vector<24x32xf32>
    %c0_1 = arith.constant 0 : index
    %c0_2 = arith.constant 0 : index
    %1 = vector.load %arg2[%c0_1, %c0_2] : memref<32x32xf32, #tpu.memory_space<vmem>>, vector<32x32xf32>
    %cst = arith.constant dense<0.000000e+00> : vector<24x32xf32>
    %2 = tpu.matmul %0, %1, %cst {dimension_numbers = #tpu.dot_dimension_numbers<[1], [0], [0], [1], [0, 0, 1, 1], [], []>} : vector<24x32xf32>, vector<32x32xf32>, vector<24x32xf32> -> vector<24x32xf32>
    %c0_3 = arith.constant 0 : index
    %c0_4 = arith.constant 0 : index
    %3 = vector.load %arg3[%c0_3, %c0_4] : memref<24x32xf32, #tpu.memory_space<vmem>>, vector<24x32xf32>
    tpu.vector_store %arg3[%c0_3, %c0_4], %2 {strides = array<i32>} : memref<24x32xf32, #tpu.memory_space<vmem>>, vector<24x32xf32>,
    return
  }
  func.func @transform_0(%arg0: i32) -> (i32, i32) {
    %c0_i32 = arith.constant 0 : i32
    %c0_i32_0 = arith.constant 0 : i32
    %c0_i32_1 = arith.constant 0 : i32
    return %c0_i32, %c0_i32_0 : i32, i32
  }
  func.func @transform_1(%arg0: i32) -> (i32, i32) {
    %c0_i32 = arith.constant 0 : i32
    %c0_i32_0 = arith.constant 0 : i32
    %c0_i32_1 = arith.constant 0 : i32
    return %c0_i32, %c0_i32_0 : i32, i32
  }
  func.func @transform_2(%arg0: i32) -> (i32, i32) {
    %c0_i32 = arith.constant 0 : i32
    %c0_i32_0 = arith.constant 0 : i32
    %c0_i32_1 = arith.constant 0 : i32
    return %c0_i32, %c0_i32_0 : i32, i32
  }
}

</mosaic_0001>

<llo_original>
// kernel: tpu_custom_call.1
$region0: #{tpu_custom_call.1}
  #allocation0 [shape = 'u32[]', space=smem, size = 0x4, offset = 0x4, fixed_abs, tag = 'smem constant byte address 0x4 - core index']
  #allocation1 [shape = 'u32[144,128]{1,0:T(1,128)}', space=vmem, size = 0x12000, scoped, tag = 'internal scratch']
  %s0 = inlined_call_operand.hbm [shape: f32[24,32], index: 0, kind: input, shape index: {}]
  %s1 = inlined_call_operand.hbm [shape: f32[32,32], index: 1, kind: input, shape index: {}]
  %s2 = inlined_call_operand.hbm [shape: f32[24,32], index: 2, kind: output, shape index: {}]
  %s3 = sld [smem:[#allocation0]]
  $region26: #{tpu_custom_call.1} parent=0
    _
  %s5 = ssub.s32 1, %s3
  %s6 = scalar_select 0, %s5, %s3
  $region1: #{tpu_custom_call.1} parent=0
    #allocation2 [shape = 'u8[12288]{0}', space=vmem, size = 0x3000, scoped, tag = 'input window, operand 0, single buffered']
    #allocation3 [shape = 's32[1]{0}', space=sflag, size = 0x4, scoped, tag = 'scoped memory for tpu_custom_call.1']
    #allocation4 [shape = 's32[1]{0}', space=sflag, size = 0x4, scoped, tag = 'scoped memory for tpu_custom_call.1']
    #allocation5 [shape = 'u8[16384]{0}', space=vmem, size = 0x4000, scoped, tag = 'input window, operand 1, single buffered']
    #allocation6 [shape = 's32[1]{0}', space=sflag, size = 0x4, scoped, tag = 'scoped memory for tpu_custom_call.1']
    #allocation7 [shape = 'u8[12288]{0}', space=vmem, size = 0x3000, scoped, tag = 'output window, operand 0, single buffered']
    %7 = vsyncpa [#allocation3], 0
    %8 = vsyncpa [#allocation6], 0
    %9 = vsyncpa [#allocation4], 0
    // Predicated region
    $region2: #{tpu_custom_call.1} parent=1 // pred_check
      _
    $region3: #{tpu_custom_call.1} parent=1 // pred_check_branch
      %11 = sbr.rel (0) target = $region5
    $region4: #{tpu_custom_call.1} parent=1 // pred_region
      %s13 = ssub.s32 384, 384
      %14 = vsyncadd [#allocation3], %s13
      %s15 = sshll.u32 [#allocation2], 4
      %s16 = int_to_ptr.vmem [resolvable:$true] %s15
      %21 = dma.hbm_to_vmem [thread:$0]  %s0, 384, %s16, [#allocation3], 128, 128, 8
    $region5: #{tpu_custom_call.1} parent=1 // pred_fallthru
      _
    // Predicated region
    $region6: #{tpu_custom_call.1} parent=1 // pred_check
      _
    $region7: #{tpu_custom_call.1} parent=1 // pred_check_branch
      %23 = sbr.rel (0) target = $region9
    $region8: #{tpu_custom_call.1} parent=1 // pred_region
      %s25 = ssub.s32 512, 512
      %26 = vsyncadd [#allocation6], %s25
      %s27 = sshll.u32 [#allocation5], 4
      %s28 = int_to_ptr.vmem [resolvable:$true] %s27
      %33 = dma.hbm_to_vmem [thread:$0]  %s1, 512, %s28, [#allocation6], 128, 128, 8
    $region9: #{tpu_custom_call.1} parent=1 // pred_fallthru
      _
    // Predicated region
    $region10: #{tpu_custom_call.1} parent=1 // pred_check
      _
    $region11: #{tpu_custom_call.1} parent=1 // pred_check_branch
      %35 = sbr.rel (0) target = $region13
    $region12: #{tpu_custom_call.1} parent=1 // pred_region
      %36 = dma.done [#allocation3], 384
    $region13: #{tpu_custom_call.1} parent=1 // pred_fallthru
      _
    // Predicated region
    $region14: #{tpu_custom_call.1} parent=1 // pred_check
      _
    $region15: #{tpu_custom_call.1} parent=1 // pred_check_branch
      %38 = sbr.rel (0) target = $region17
    $region16: #{tpu_custom_call.1} parent=1 // pred_region
      %39 = dma.done [#allocation6], 512
    $region17: #{tpu_custom_call.1} parent=1 // pred_fallthru
      _
    %v40 = vld [vmem:[#allocation2] sm:$0xff]
    %v41 = vld [vmem:[#allocation2 + $0x8] sm:$0xff]
    %v42 = vld [vmem:[#allocation2 + $0x10] sm:$0xff]
    %v43 = vld [vmem:[#allocation5] sm:$0xff]
    %v44 = vld [vmem:[#allocation5 + $0x8] sm:$0xff]
    %v45 = vld [vmem:[#allocation5 + $0x10] sm:$0xff]
    %v46 = vld [vmem:[#allocation5 + $0x18] sm:$0xff]
    %vm47 = vcmask 261120
    %v49 = vsel %vm47, %v40, 0
    %v52 = vsel %vm47, %v41, 0
    %v55 = vsel %vm47, %v42, 0
    %57 = vmatprep.subr.mxu0 0.0
    %58 = vmatpush1.msra.mxu0 %v43
    %59 = vmatprep.subr.mxu0 0.0
    %60 = vmatpush1.msra.mxu0 %v44
    %61 = vmatprep.subr.mxu0 0.0
    %62 = vmatpush1.msra.mxu0 %v45
    %63 = vmatprep.subr.mxu0 0.0
    %64 = vmatpush1.msra.mxu0 %v46
    %65 = vmatprep.subr.mxu0 0.0
    %66 = vmatpush1.msra.mxu0 0.0
    %67 = vmatprep.subr.mxu0 0.0
    %68 = vmatpush1.msra.mxu0 0.0
    %69 = vmatprep.subr.mxu0 0.0
    %70 = vmatpush1.msra.mxu0 0.0
    %71 = vmatprep.subr.mxu0 0.0
    %72 = vmatpush1.msra.mxu0 0.0
    %73 = vmatprep.subr.mxu0 0.0
    %74 = vmatpush1.msra.mxu0 0.0
    %75 = vmatprep.subr.mxu0 0.0
    %76 = vmatpush1.msra.mxu0 0.0
    %77 = vmatprep.subr.mxu0 0.0
    %78 = vmatpush1.msra.mxu0 0.0
    %79 = vmatprep.subr.mxu0 0.0
    %80 = vmatpush1.msra.mxu0 0.0
    %81 = vmatprep.subr.mxu0 0.0
    %82 = vmatpush1.msra.mxu0 0.0
    %83 = vmatprep.subr.mxu0 0.0
    %84 = vmatpush1.msra.mxu0 0.0
    %85 = vmatprep.subr.mxu0 0.0
    %86 = vmatpush1.msra.mxu0 0.0
    %87 = vmatprep.subr.mxu0 0.0
    %88 = vmatpush1.msra.mxu0 0.0
    %89 = vmatprep.subr.mxu0 0.0
    %90 = vmatpush1.msra.mxu0 0.0
    %91 = vmatprep.subr.mxu0 0.0
    %92 = vmatpush1.msra.mxu0 0.0
    %93 = vmatprep.subr.mxu0 0.0
    %94 = vmatpush1.msra.mxu0 0.0
    %95 = vmatprep.subr.mxu0 0.0
    %96 = vmatpush1.msra.mxu0 0.0
    %97 = vmatprep.subr.mxu0 0.0
    %98 = vmatpush1.msra.mxu0 0.0
    %99 = vmatprep.subr.mxu0 0.0
    %100 = vmatpush1.msra.mxu0 0.0
    %101 = vmatprep.subr.mxu0 0.0
    %102 = vmatpush1.msra.mxu0 0.0
    %103 = vmatprep.subr.mxu0 0.0
    %104 = vmatpush1.msra.mxu0 0.0
    %105 = vmatprep.subr.mxu0 0.0
    %106 = vmatpush1.msra.mxu0 0.0
    %107 = vmatprep.subr.mxu0 0.0
    %108 = vmatpush1.msra.mxu0 0.0
    %109 = vmatprep.subr.mxu0 0.0
    %110 = vmatpush1.msra.mxu0 0.0
    %111 = vmatprep.subr.mxu0 0.0
    %112 = vmatpush1.msra.mxu0 0.0
    %113 = vmatprep.subr.mxu0 0.0
    %114 = vmatpush1.msra.mxu0 0.0
    %115 = vmatprep.subr.mxu0 0.0
    %116 = vmatpush1.msra.mxu0 0.0
    %117 = vmatprep.subr.mxu0 0.0
    %118 = vmatpush1.msra.mxu0 0.0
    %119 = vmatprep.subr.mxu0 0.0
    %120 = vmatpush1.msra.mxu0 0.0
    %121 = vmatprep.mubr.f32.mxu0 0.0
    %122 = vmatmul.mubr.f32.gmra.mrb[0].mxu0 %v49
    %v123 = vpop.f32.mrb[0].mxu0
    %v124 = vadd.f32 0.0, %v123
    %v125 = vpop.f32.mrb[0].mxu0
    %126 = vmatprep.mubr.f32.mxu0 0.0
    %127 = vmatmul.mubr.f32.gmra.mrb[0].mxu0 %v52
    %v128 = vpop.f32.mrb[0].mxu0
    %v129 = vadd.f32 0.0, %v128
    %v130 = vpop.f32.mrb[0].mxu0
    %131 = vmatprep.mubr.f32.mxu0 0.0
    %132 = vmatmul.mubr.f32.gmra.mrb[0].mxu0 %v55
    %v133 = vpop.f32.mrb[0].mxu0
    %v134 = vadd.f32 0.0, %v133
    %v135 = vpop.f32.mrb[0].mxu0
    %136 = vdwg.mxu0
    %137 = vst.msk [vmem:[#allocation7] sm:$0xff] %vm47, %v124
    %138 = vst.msk [vmem:[#allocation7 + $0x8] sm:$0xff] %vm47, %v129
    %139 = vst.msk [vmem:[#allocation7 + $0x10] sm:$0xff] %vm47, %v134
    // Predicated region
    $region18: #{tpu_custom_call.1} parent=1 // pred_check
      _
    $region19: #{tpu_custom_call.1} parent=1 // pred_check_branch
      %141 = sbr.rel (0) target = $region21
    $region20: #{tpu_custom_call.1} parent=1 // pred_region
      %s143 = ssub.s32 384, 384
      %144 = vsyncadd [#allocation4], %s143
      %s145 = sshll.u32 [#allocation7], 4
      %s146 = int_to_ptr.vmem [resolvable:$true] %s145
      %151 = dma.vmem_to_hbm [thread:$0]  %s146, 384, %s2, [#allocation4], 128, 128, 8
    $region21: #{tpu_custom_call.1} parent=1 // pred_fallthru
      _
    // Predicated region
    $region22: #{tpu_custom_call.1} parent=1 // pred_check
      _
    $region23: #{tpu_custom_call.1} parent=1 // pred_check_branch
      %153 = sbr.rel (0) target = $region25
    $region24: #{tpu_custom_call.1} parent=1 // pred_region
      %154 = dma.done [#allocation4], 384
    $region25: #{tpu_custom_call.1} parent=1 // pred_fallthru
      _
    %155 = vsyncpa [#allocation3], 1
    %156 = vsyncpa [#allocation6], 1
    %157 = vsyncpa [#allocation4], 1

</llo_original>
